<compile_context>
chip_gen: v7x
topology: tpu7x:2x2x1
jax: 0.10.0
libtpu: 0.0.40
codegen_flags: <defaults>
</compile_context>

<pallas_src>
import functools

import jax
import jax.numpy as jnp
from jax.experimental import pallas as pl
from jax.experimental.pallas import tpu as pltpu

LPAD = 128         # one vreg row of lanes: requires S + 1 <= 128 and steps <= 128
SUBLANES = 8
ROW_BLOCK = 512    # sublane-block size for the parallel grid when B is large


def _round_up(n, m):
    return -(-n // m) * m


# ---------------------------------------------------------------------------
# Kernel: one MXU matmul per (row_block, 128) tile of the packed series array.
# ---------------------------------------------------------------------------
def _arima_kernel(x_ref, w_ref, o_ref):
    o_ref[...] = jnp.dot(x_ref[...], w_ref[...], preferred_element_type=jnp.float32)


# ---------------------------------------------------------------------------
# Wrapper: fold differencing + AR recursion + inverse differencing + bias into
# one affine map  preds = x @ M + c  (built in XLA, tiny static shapes).
# ---------------------------------------------------------------------------
def _build_affine_map(ar_w, ar_b, ma_b, *, S, p, d, q, steps):
    f32 = jnp.float32
    # Difference operator: diff = D @ x_series, D is (S - d, S).
    D = jnp.eye(S, dtype=f32)
    for _ in range(d):
        D = D[1:, :] - D[:-1, :]
    s_diff = S - d

    bias = jnp.asarray(ar_b, f32)
    if q > 0:
        # Degenerate MA term: error series is identically zero -> only ma.bias matters.
        bias = bias + jnp.asarray(ma_b, f32)

    # AR recursion carried as an affine map of the raw series x.  Row k of Wx (temporal
    # order) is the coefficient vector of the k-th diff-series element over x; bvec is
    # the accumulated scalar offset of that element.
    arw = ar_w.astype(f32).reshape(p)
    Wx = D                                                # (s_diff, S)
    bvec = jnp.zeros((s_diff,), f32)
    for _ in range(steps):
        pred_w = arw @ Wx[-p:, :]                         # (S,)
        pred_b = arw @ bvec[-p:] + bias                   # scalar
        Wx = jnp.concatenate([Wx, pred_w[None, :]], axis=0)
        bvec = jnp.concatenate([bvec, pred_b[None]], axis=0)
    Wf = Wx[s_diff:, :]                                   # (steps, S)  diff-scale forecasts
    bf = bvec[s_diff:]                                    # (steps,)

    # Inverse differencing (standard order-d integration), folded into the affine map.
    # Last value of the level-j series is (D_j @ x)[-1], itself linear in x.
    # TODO(synk): `inverse_difference` is undefined in the torch source; this is the
    # standard cumsum + last-observed-value integration.
    Dj = jnp.eye(S, dtype=f32)
    level_last = []
    for _ in range(d):
        level_last.append(Dj[-1, :])                      # (S,)
        Dj = Dj[1:, :] - Dj[:-1, :]
    C = jnp.tril(jnp.ones((steps, steps), f32))           # cumulative-sum matrix
    for j in reversed(range(d)):
        Wf = C @ Wf + jnp.ones((steps, 1), f32) * level_last[j][None, :]
        bf = C @ bf

    return Wf, bf                                         # preds = x @ Wf.T + bf


def arima_forward(x, ar_w, ar_b, ma_w, ma_b, *, p, d, q, steps):
    """x: (B, S, 1) -> (B, steps, 1).  B == 1 matches the torch module; B > 1 applies the
    same model to each series independently (batched along sublanes)."""
    B, S, C = x.shape
    assert C == 1, "the torch module's view(1, -1) into Linear(p, 1) assumes C == 1"
    assert S + 1 <= LPAD and steps <= LPAD, "toy kernel: series / forecasts must fit one vreg row"
    s_diff = S - d
    assert 0 < p <= s_diff and q <= s_diff

    del ma_w  # the module's error series is identically zero -> only ma.bias matters

    # Effective affine map (built once in XLA; steps*p scalar work).
    Wf, bf = _build_affine_map(ar_w, ar_b, ma_b, S=S, p=p, d=d, q=q, steps=steps)

    # Effective weight matrix: rows = input lanes, cols = output lanes (lane-dense preds).
    W_eff = jnp.zeros((LPAD, LPAD), jnp.float32)
    W_eff = W_eff.at[:S, :steps].set(Wf.T)
    W_eff = W_eff.at[S, :steps].set(bf)                   # bias via constant-1 lane

    # Pack series rows: x values in lanes [0, S), constant 1 in lane S.
    if B <= ROW_BLOCK:
        b_pad = _round_up(B, SUBLANES)
        row_block = b_pad
    else:
        b_pad = _round_up(B, ROW_BLOCK)
        row_block = ROW_BLOCK
    x_rows = jnp.zeros((b_pad, LPAD), jnp.float32)
    x_rows = x_rows.at[:B, :S].set(x[:, :, 0].astype(jnp.float32))
    x_rows = x_rows.at[:, S].set(1.0)

    grid = (b_pad // row_block,)
    out = pl.pallas_call(
        _arima_kernel,
        out_shape=jax.ShapeDtypeStruct((b_pad, LPAD), jnp.float32),
        grid=grid,
        in_specs=[
            pl.BlockSpec((row_block, LPAD), lambda i: (i, 0)),   # series rows
            pl.BlockSpec((LPAD, LPAD), lambda i: (0, 0)),        # effective weights
        ],
        out_specs=pl.BlockSpec((row_block, LPAD), lambda i: (i, 0)),
        compiler_params=pltpu.CompilerParams(dimension_semantics=("parallel",)),
    )(x_rows, W_eff)

    # Forecasts are lane-dense starting at lane 0 -> contiguous leading-lane slice.
    preds = out[:B, :steps]
    return preds.reshape(B, steps, C)


# ---------------------------------------------------------------------------
# Plain-JAX reference mirroring the torch forward for a single series (B == 1).
# ---------------------------------------------------------------------------
def arima_reference(x, ar_w, ar_b, ma_w, ma_b, *, p, d, q, steps):
    series = x[0, :, 0].astype(jnp.float32)
    levels = [series]
    for _ in range(d):
        levels.append(levels[-1][1:] - levels[-1][:-1])
    diff = levels[-1]
    err = jnp.zeros_like(diff)
    preds = []
    for _ in range(steps):
        ar_out = jnp.dot(diff[-p:], ar_w) + ar_b
        ma_out = (jnp.dot(err[-q:], ma_w) + ma_b) if q > 0 else jnp.float32(0.0)
        pred = ar_out + ma_out
        preds.append(pred)
        diff = jnp.concatenate([diff, pred[None]])
        err = jnp.concatenate([err, (pred - ar_out - ma_out)[None]])
    preds = jnp.stack(preds)
    for j in reversed(range(d)):
        preds = levels[j][-1] + jnp.cumsum(preds)
    return preds.reshape(1, steps, 1)


if __name__ == "__main__":
    p_, d_, q_ = 3, 1, 2
    B, S, C = 4, 16, 1     # B > 1: independent series batched along the sublane axis
    steps = 4

    key = jax.random.PRNGKey(0)
    kx, kaw, kab, kmw, kmb = jax.random.split(key, 5)
    x = jax.random.normal(kx, (B, S, C), dtype=jnp.float32)
    # nn.Linear(p, 1): weight (1, p) row + scalar bias; nn.Linear(q, 1) likewise.
    ar_w = 0.3 * jax.random.normal(kaw, (p_,), dtype=jnp.float32)
    ar_b = 0.1 * jax.random.normal(kab, (), dtype=jnp.float32)
    ma_w = 0.3 * jax.random.normal(kmw, (q_,), dtype=jnp.float32)
    ma_b = 0.1 * jax.random.normal(kmb, (), dtype=jnp.float32)

    out = arima_forward(x, ar_w, ar_b, ma_w, ma_b, p=p_, d=d_, q=q_, steps=steps)
    out = jax.block_until_ready(out)
    assert out.shape == (B, steps, C)

    # Validate each batched row against the single-series (module-faithful) reference.
    for b in range(B):
        ref_b = arima_reference(x[b:b + 1], ar_w, ar_b, ma_w, ma_b,
                                p=p_, d=d_, q=q_, steps=steps)
        assert jnp.allclose(out[b:b + 1], ref_b, rtol=1e-4, atol=1e-4), (b, out[b], ref_b)

    print("KERNEL_OK")
</pallas_src>

<mosaic_0001>
module attributes {stable_mosaic.version = 11 : i64} {
  func.func @_arima_kernel(%arg0: i32, %arg1: memref<8x128xf32, #tpu.memory_space<vmem>>, %arg2: memref<128x128xf32, #tpu.memory_space<vmem>>, %arg3: memref<8x128xf32, #tpu.memory_space<vmem>>) attributes {dimension_semantics = [#tpu.dimension_semantics<parallel>], iteration_bounds = array<i64: 1>, scalar_prefetch = 0 : i64, scratch_operands = 0 : i64, tpu.core_type = #tpu.core_type<tc>, window_params = [{transform_indices = @transform_0, window_bounds = array<i64: 8, 128>}, {pipeline_mode = #tpu.pipeline_mode<synchronous>, transform_indices = @transform_1, window_bounds = array<i64: 128, 128>}, {transform_indices = @transform_2, window_bounds = array<i64: 8, 128>}]} {
    %c0 = arith.constant 0 : index
    %c0_0 = arith.constant 0 : index
    %0 = vector.load %arg1[%c0, %c0_0] : memref<8x128xf32, #tpu.memory_space<vmem>>, vector<8x128xf32>
    %c0_1 = arith.constant 0 : index
    %c0_2 = arith.constant 0 : index
    %1 = vector.load %arg2[%c0_1, %c0_2] : memref<128x128xf32, #tpu.memory_space<vmem>>, vector<128x128xf32>
    %cst = arith.constant dense<0.000000e+00> : vector<8x128xf32>
    %2 = tpu.matmul %0, %1, %cst {dimension_numbers = #tpu.dot_dimension_numbers<[1], [0], [0], [1], [0, 0, 1, 1], [], []>} : vector<8x128xf32>, vector<128x128xf32>, vector<8x128xf32> -> vector<8x128xf32>
    %c0_3 = arith.constant 0 : index
    %c0_4 = arith.constant 0 : index
    %3 = vector.load %arg3[%c0_3, %c0_4] : memref<8x128xf32, #tpu.memory_space<vmem>>, vector<8x128xf32>
    tpu.vector_store %arg3[%c0_3, %c0_4], %2 {strides = array<i32>} : memref<8x128xf32, #tpu.memory_space<vmem>>, vector<8x128xf32>,
    return
  }
  func.func @transform_0(%arg0: i32) -> (i32, i32) {
    %c0_i32 = arith.constant 0 : i32
    %c0_i32_0 = arith.constant 0 : i32
    return %arg0, %c0_i32 : i32, i32
  }
  func.func @transform_1(%arg0: i32) -> (i32, i32) {
    %c0_i32 = arith.constant 0 : i32
    %c0_i32_0 = arith.constant 0 : i32
    %c0_i32_1 = arith.constant 0 : i32
    return %c0_i32, %c0_i32_0 : i32, i32
  }
  func.func @transform_2(%arg0: i32) -> (i32, i32) {
    %c0_i32 = arith.constant 0 : i32
    %c0_i32_0 = arith.constant 0 : i32
    return %arg0, %c0_i32 : i32, i32
  }
}

</mosaic_0001>

<llo_original>
// kernel: tpu_custom_call.1
$region0: #{tpu_custom_call.1}
  #allocation0 [shape = 'u32[]', space=smem, size = 0x4, offset = 0x4, fixed_abs, tag = 'smem constant byte address 0x4 - core index']
  #allocation1 [shape = 'u32[144,128]{1,0:T(1,128)}', space=vmem, size = 0x12000, scoped, tag = 'internal scratch']
  %s0 = inlined_call_operand.hbm [shape: f32[8,128], index: 0, kind: input, shape index: {}]
  %s1 = inlined_call_operand.hbm [shape: f32[128,128], index: 1, kind: input, shape index: {}]
  %s2 = inlined_call_operand.hbm [shape: f32[8,128], index: 2, kind: output, shape index: {}]
  %s3 = sld [smem:[#allocation0]]
  $region26: #{tpu_custom_call.1} parent=0
    _
  %s5 = ssub.s32 1, %s3
  %s6 = scalar_select 0, %s5, %s3
  $region1: #{tpu_custom_call.1} parent=0
    #allocation2 [shape = 'u8[4096]{0}', space=vmem, size = 0x1000, scoped, tag = 'input window, operand 0, single buffered']
    #allocation3 [shape = 's32[1]{0}', space=sflag, size = 0x4, scoped, tag = 'scoped memory for tpu_custom_call.1']
    #allocation4 [shape = 's32[1]{0}', space=sflag, size = 0x4, scoped, tag = 'scoped memory for tpu_custom_call.1']
    #allocation5 [shape = 'u8[65536]{0}', space=vmem, size = 0x10000, scoped, tag = 'input window, operand 1, single buffered']
    #allocation6 [shape = 's32[1]{0}', space=sflag, size = 0x4, scoped, tag = 'scoped memory for tpu_custom_call.1']
    #allocation7 [shape = 'u8[4096]{0}', space=vmem, size = 0x1000, scoped, tag = 'output window, operand 0, single buffered']
    %7 = vsyncpa [#allocation3], 0
    %8 = vsyncpa [#allocation6], 0
    %9 = vsyncpa [#allocation4], 0
    // Predicated region
    $region2: #{tpu_custom_call.1} parent=1 // pred_check
      _
    $region3: #{tpu_custom_call.1} parent=1 // pred_check_branch
      %11 = sbr.rel (0) target = $region5
    $region4: #{tpu_custom_call.1} parent=1 // pred_region
      %s13 = ssub.s32 128, 128
      %14 = vsyncadd [#allocation3], %s13
      %s16 = sshll.u32 [#allocation2], 4
      %s17 = int_to_ptr.vmem [resolvable:$true] %s16
      %19 = dma.hbm_to_vmem [thread:$0]  %s0, 128, %s17, [#allocation3]
    $region5: #{tpu_custom_call.1} parent=1 // pred_fallthru
      _
    // Predicated region
    $region6: #{tpu_custom_call.1} parent=1 // pred_check
      _
    $region7: #{tpu_custom_call.1} parent=1 // pred_check_branch
      %21 = sbr.rel (0) target = $region9
    $region8: #{tpu_custom_call.1} parent=1 // pred_region
      %s23 = ssub.s32 2048, 2048
      %24 = vsyncadd [#allocation6], %s23
      %s25 = sshll.u32 [#allocation5], 4
      %s26 = int_to_ptr.vmem [resolvable:$true] %s25
      %31 = dma.hbm_to_vmem [thread:$0]  %s1, 2048, %s26, [#allocation6], 128, 128, 8
    $region9: #{tpu_custom_call.1} parent=1 // pred_fallthru
      _
    // Predicated region
    $region10: #{tpu_custom_call.1} parent=1 // pred_check
      _
    $region11: #{tpu_custom_call.1} parent=1 // pred_check_branch
      %33 = sbr.rel (0) target = $region13
    $region12: #{tpu_custom_call.1} parent=1 // pred_region
      %34 = dma.done [#allocation3], 128
    $region13: #{tpu_custom_call.1} parent=1 // pred_fallthru
      _
    // Predicated region
    $region14: #{tpu_custom_call.1} parent=1 // pred_check
      _
    $region15: #{tpu_custom_call.1} parent=1 // pred_check_branch
      %36 = sbr.rel (0) target = $region17
    $region16: #{tpu_custom_call.1} parent=1 // pred_region
      %37 = dma.done [#allocation6], 2048
    $region17: #{tpu_custom_call.1} parent=1 // pred_fallthru
      _
    %v38 = vld [vmem:[#allocation2] sm:$0xff]
    %v39 = vld [vmem:[#allocation5] sm:$0xff]
    %v40 = vld [vmem:[#allocation5 + $0x8] sm:$0xff]
    %v41 = vld [vmem:[#allocation5 + $0x10] sm:$0xff]
    %v42 = vld [vmem:[#allocation5 + $0x18] sm:$0xff]
    %v43 = vld [vmem:[#allocation5 + $0x20] sm:$0xff]
    %v44 = vld [vmem:[#allocation5 + $0x28] sm:$0xff]
    %v45 = vld [vmem:[#allocation5 + $0x30] sm:$0xff]
    %v46 = vld [vmem:[#allocation5 + $0x38] sm:$0xff]
    %v47 = vld [vmem:[#allocation5 + $0x40] sm:$0xff]
    %v48 = vld [vmem:[#allocation5 + $0x48] sm:$0xff]
    %v49 = vld [vmem:[#allocation5 + $0x50] sm:$0xff]
    %v50 = vld [vmem:[#allocation5 + $0x58] sm:$0xff]
    %v51 = vld [vmem:[#allocation5 + $0x60] sm:$0xff]
    %v52 = vld [vmem:[#allocation5 + $0x68] sm:$0xff]
    %v53 = vld [vmem:[#allocation5 + $0x70] sm:$0xff]
    %v54 = vld [vmem:[#allocation5 + $0x78] sm:$0xff]
    %55 = vmatprep.subr.mxu0 0.0
    %56 = vmatpush1.msra.mxu0 %v39
    %57 = vmatprep.subr.mxu0 0.0
    %58 = vmatpush1.msra.mxu0 %v40
    %59 = vmatprep.subr.mxu0 0.0
    %60 = vmatpush1.msra.mxu0 %v41
    %61 = vmatprep.subr.mxu0 0.0
    %62 = vmatpush1.msra.mxu0 %v42
    %63 = vmatprep.subr.mxu0 0.0
    %64 = vmatpush1.msra.mxu0 %v43
    %65 = vmatprep.subr.mxu0 0.0
    %66 = vmatpush1.msra.mxu0 %v44
    %67 = vmatprep.subr.mxu0 0.0
    %68 = vmatpush1.msra.mxu0 %v45
    %69 = vmatprep.subr.mxu0 0.0
    %70 = vmatpush1.msra.mxu0 %v46
    %71 = vmatprep.subr.mxu0 0.0
    %72 = vmatpush1.msra.mxu0 %v47
    %73 = vmatprep.subr.mxu0 0.0
    %74 = vmatpush1.msra.mxu0 %v48
    %75 = vmatprep.subr.mxu0 0.0
    %76 = vmatpush1.msra.mxu0 %v49
    %77 = vmatprep.subr.mxu0 0.0
    %78 = vmatpush1.msra.mxu0 %v50
    %79 = vmatprep.subr.mxu0 0.0
    %80 = vmatpush1.msra.mxu0 %v51
    %81 = vmatprep.subr.mxu0 0.0
    %82 = vmatpush1.msra.mxu0 %v52
    %83 = vmatprep.subr.mxu0 0.0
    %84 = vmatpush1.msra.mxu0 %v53
    %85 = vmatprep.subr.mxu0 0.0
    %86 = vmatpush1.msra.mxu0 %v54
    %87 = vmatprep.subr.mxu0 0.0
    %88 = vmatpush1.msra.mxu0 0.0
    %89 = vmatprep.subr.mxu0 0.0
    %90 = vmatpush1.msra.mxu0 0.0
    %91 = vmatprep.subr.mxu0 0.0
    %92 = vmatpush1.msra.mxu0 0.0
    %93 = vmatprep.subr.mxu0 0.0
    %94 = vmatpush1.msra.mxu0 0.0
    %95 = vmatprep.subr.mxu0 0.0
    %96 = vmatpush1.msra.mxu0 0.0
    %97 = vmatprep.subr.mxu0 0.0
    %98 = vmatpush1.msra.mxu0 0.0
    %99 = vmatprep.subr.mxu0 0.0
    %100 = vmatpush1.msra.mxu0 0.0
    %101 = vmatprep.subr.mxu0 0.0
    %102 = vmatpush1.msra.mxu0 0.0
    %103 = vmatprep.subr.mxu0 0.0
    %104 = vmatpush1.msra.mxu0 0.0
    %105 = vmatprep.subr.mxu0 0.0
    %106 = vmatpush1.msra.mxu0 0.0
    %107 = vmatprep.subr.mxu0 0.0
    %108 = vmatpush1.msra.mxu0 0.0
    %109 = vmatprep.subr.mxu0 0.0
    %110 = vmatpush1.msra.mxu0 0.0
    %111 = vmatprep.subr.mxu0 0.0
    %112 = vmatpush1.msra.mxu0 0.0
    %113 = vmatprep.subr.mxu0 0.0
    %114 = vmatpush1.msra.mxu0 0.0
    %115 = vmatprep.subr.mxu0 0.0
    %116 = vmatpush1.msra.mxu0 0.0
    %117 = vmatprep.subr.mxu0 0.0
    %118 = vmatpush1.msra.mxu0 0.0
    %119 = vmatprep.mubr.f32.mxu0 0.0
    %120 = vmatmul.mubr.f32.gmra.mrb[0].mxu0 %v38
    %v121 = vpop.f32.mrb[0].mxu0
    %v122 = vadd.f32 0.0, %v121
    %v123 = vpop.f32.mrb[0].mxu0
    %124 = vdwg.mxu0
    %125 = vst [vmem:[#allocation7] sm:$0xff] %v122
    // Predicated region
    $region18: #{tpu_custom_call.1} parent=1 // pred_check
      _
    $region19: #{tpu_custom_call.1} parent=1 // pred_check_branch
      %127 = sbr.rel (0) target = $region21
    $region20: #{tpu_custom_call.1} parent=1 // pred_region
      %s129 = ssub.s32 128, 128
      %130 = vsyncadd [#allocation4], %s129
      %s132 = sshll.u32 [#allocation7], 4
      %s133 = int_to_ptr.vmem [resolvable:$true] %s132
      %135 = dma.vmem_to_hbm [thread:$0]  %s133, 128, %s2, [#allocation4]
    $region21: #{tpu_custom_call.1} parent=1 // pred_fallthru
      _
    // Predicated region
    $region22: #{tpu_custom_call.1} parent=1 // pred_check
      _
    $region23: #{tpu_custom_call.1} parent=1 // pred_check_branch
      %137 = sbr.rel (0) target = $region25
    $region24: #{tpu_custom_call.1} parent=1 // pred_region
      %138 = dma.done [#allocation4], 128
    $region25: #{tpu_custom_call.1} parent=1 // pred_fallthru
      _
    %139 = vsyncpa [#allocation3], 1
    %140 = vsyncpa [#allocation6], 1
    %141 = vsyncpa [#allocation4], 1

</llo_original>
